<compile_context>
chip_gen: v7x
topology: tpu7x:2x2x1
jax: 0.10.0
libtpu: 0.0.40
codegen_flags: <defaults>
</compile_context>

<pallas_src>
import functools
import math

import jax
import jax.numpy as jnp
from jax import lax
from jax.experimental import pallas as pl
from jax.experimental.pallas import tpu as pltpu


_CLAMP_MIN = 1e-8
_VMEM_TILE_BUDGET = 40 * 1024 * 1024   # keep per-step working set v7x-safe (64 MiB phys)


def _round_up(x, m):
    return ((x + m - 1) // m) * m


def _lcm(a, b):
    return a * b // math.gcd(a, b)


def _vmem_bytes(tile, D, itemsize):
    """Rough per-step VMEM estimate for the tile chooser."""
    a_tiles = 2 * 2 * tile * D * itemsize      # row + col A tiles, double-buffered
    temps = 4 * tile * tile * 4                # g, clamp(g^2), diag-step masks
    small = 2 * (2 * tile * 4) + tile * 4      # out block + running-total scratch
    return a_tiles + temps + small


def _choose_tile(M, r, D, itemsize):
    """Tile rows = multiple of lcm(r, 128) (group- and lane-aligned), <= ~512."""
    base = _lcm(r, 128)
    max_mult = max(1, 512 // base)
    cands = [base * m for m in range(1, max_mult + 1)]
    fits = [t for t in cands if _vmem_bytes(t, D, itemsize) <= _VMEM_TILE_BUDGET]
    cands = fits or cands[:1]                  # always keep at least `base`
    # Prefer the largest tile whose padding overhead stays small; otherwise
    # minimize padded size (total compute scales with m_pad^2).
    good = [t for t in cands if _round_up(M, t) <= 1.25 * M]
    if good:
        tile = max(good)
    else:
        tile = min(cands, key=lambda t: (_round_up(M, t), -t))
    # v7x has two TensorCores: keep >= 2 blocks on the "parallel" row axis for
    # mid-size problems instead of collapsing to a (1, 1) grid.
    if M > 256 and _round_up(M, tile) // tile < 2:
        smaller = [t for t in cands if _round_up(M, t) // t >= 2]
        if smaller:
            tile = max(smaller)
    return tile


def _lora_kernel(a_row_ref, a_col_ref, out_ref, tot_ref, *, r, pad_rows):
    """Grid = (row-block i [parallel], column-block k [reduction]) over A.

    The Gram tile is oriented (m', m): the reduction index m' (block k) is on
    the sublane axis and the per-row output index m (block i) on the lane
    axis, so all reductions are sublane sums and output stores are lane-dense.
    """
    i = pl.program_id(0)
    k = pl.program_id(1)

    @pl.when(k == 0)
    def _init():
        tot_ref[...] = jnp.zeros_like(tot_ref)

    a_r = a_row_ref[...]                       # (T, D)  rows m   (native dtype)
    a_c = a_col_ref[...]                       # (T, D)  rows m'  (native dtype)

    # Gram tile on the MXU: contract D of both operands, f32 accumulation.
    g = lax.dot_general(a_c, a_r,
                        dimension_numbers=(((1,), (1,)), ((), ())),
                        preferred_element_type=jnp.float32)      # (T, T): [m', m]
    sq = jnp.maximum(g * g, _CLAMP_MIN)

    # Running per-row total of clamp(G^2) over ALL m'.  Padded m' rows (A = 0)
    # each add exactly clamp(0, 1e-8) = 1e-8; compensated in _finalize.
    tot_ref[...] += jnp.sum(sq, axis=0, keepdims=True)           # (1, T)

    @pl.when(k == i)
    def _diagonal():
        # Same-sample pairs live only on the diagonal tile: tiles are a
        # multiple of lcm(r, 128), so groups of r rows never straddle a tile
        # and local indices suffice for the group mask.  Padded rows (beyond
        # M = N*r) always fall in groups no valid row belongs to.
        t = g.shape[0]
        rid = lax.broadcasted_iota(jnp.int32, (t, 1), 0)         # local m'
        cid = lax.broadcasted_iota(jnp.int32, (1, t), 1)         # local m
        if (r & (r - 1)) == 0:                 # power-of-two r: VPU-native shift
            s = r.bit_length() - 1
            same = (rid >> s) == (cid >> s)
        else:
            same = (rid // r) == (cid // r)
        pos = jnp.where(same & (rid != cid), g, 0.0)
        own = jnp.where(same, sq, 0.0)
        out_ref[0:1, :] = jnp.sum(pos, axis=0, keepdims=True)    # positive-pair sums
        out_ref[1:2, :] = -jnp.sum(own, axis=0, keepdims=True)   # minus same-sample sq

    @pl.when(k == pl.num_programs(1) - 1)
    def _finalize():
        # neg_row = total clamp(G^2) - same-sample part - padded-row 1e-8s.
        out_ref[1:2, :] += tot_ref[...] - (pad_rows * _CLAMP_MIN)


def evd_lora_loss(a, reduction="mean", matmul_dtype=None):
    """Pallas implementation of EVDLoRA.forward (default config).

    Args:
      a: (N, r, D) array of context embeddings (f32 or bf16), r >= 2.
      reduction: 'mean' or 'none'.
      matmul_dtype: optional dtype (e.g. jnp.bfloat16) to feed the MXU with;
        default None keeps the input's native dtype (exact f32 semantics).

    Returns:
      (lora_loss, loss_dict) matching the PyTorch module.  loss_dict values
      are JAX scalars (convert to Python floats on the host only for logging).
    """
    N, r, D = a.shape
    assert r >= 2, "Should have at least one pair."
    M = N * r

    A = a.reshape(M, D)
    if matmul_dtype is not None:
        A = A.astype(matmul_dtype)
    itemsize = A.dtype.itemsize

    tile = _choose_tile(M, r, D, itemsize)
    m_pad = _round_up(M, tile)
    if m_pad != M:
        A = jnp.pad(A, ((0, m_pad - M), (0, 0)))

    grid = (m_pad // tile, m_pad // tile)
    kernel = functools.partial(_lora_kernel, r=r, pad_rows=m_pad - M)

    est = _vmem_bytes(tile, D, itemsize)
    vmem_limit = int(max(32 * 1024 * 1024, min(est + (8 << 20), 96 * 1024 * 1024)))

    out = pl.pallas_call(
        kernel,
        out_shape=jax.ShapeDtypeStruct((2, m_pad), jnp.float32),
        grid_spec=pltpu.PrefetchScalarGridSpec(
            num_scalar_prefetch=0,
            grid=grid,
            in_specs=[
                pl.BlockSpec((tile, D), lambda i, k: (i, 0)),   # A row tile (m)
                pl.BlockSpec((tile, D), lambda i, k: (k, 0)),   # A col tile (m')
            ],
            out_specs=pl.BlockSpec((2, tile), lambda i, k: (0, i)),
            scratch_shapes=[pltpu.VMEM((1, tile), jnp.float32)],
        ),
        compiler_params=pltpu.CompilerParams(
            dimension_semantics=("parallel", "arbitrary"),
            vmem_limit_bytes=vmem_limit),
    )(A, A)

    pos_row = out[0, :M]          # sum_{m' same sample, m'!=m} G[m,m']
    neg_row = out[1, :M]          # sum_{m' other samples} clamp(G[m,m']^2, 1e-8)

    # O(M) per-sample regrouping + scaling (trivial; intentionally outside the
    # kernel — the O(M^2 D) / O(M^2) work is all inside the pallas_call above).
    sim_pos = pos_row.reshape(N, r).sum(axis=1) / float(r * (r - 1))
    sim_neg_sq = neg_row.reshape(N, r).sum(axis=1) / float((N - 1) * r * r)
    lora_loss = -2.0 * sim_pos + sim_neg_sq

    mean_sim_pos = jnp.mean(sim_pos)
    mean_sim_neg = jnp.mean(sim_neg_sq)
    if reduction == "mean":
        lora_loss = jnp.mean(lora_loss)

    loss_dict = {
        "train/loss": jnp.mean(lora_loss),
        "train/mean_sim_pos": mean_sim_pos,
        "train/mean_sim_neg": mean_sim_neg,
    }
    return lora_loss, loss_dict


def _reference_loss(a, reduction="mean"):
    """Pure-JAX reference reproducing the PyTorch semantics, for validation."""
    N, r, D = a.shape
    a = a.astype(jnp.float32)
    dot = jnp.einsum("ijd,kld->ikjl", a, a, precision="highest")   # (N, N, r, r)
    eye_r = jnp.eye(r, dtype=bool)
    eye_n = jnp.eye(N, dtype=bool)
    pos_block = dot[jnp.arange(N), jnp.arange(N)]                  # (N, r, r)
    sim_pos = jnp.where(~eye_r[None], pos_block, 0.0).sum(axis=(1, 2)) / (r * (r - 1))
    neg_sq = jnp.maximum(dot ** 2, 1e-8)
    neg_mask = (~eye_n)[:, :, None, None]
    sim_neg_sq = jnp.where(neg_mask, neg_sq, 0.0).sum(axis=(1, 2, 3)) / ((N - 1) * r * r)
    loss = -2.0 * sim_pos + sim_neg_sq
    if reduction == "mean":
        loss = jnp.mean(loss)
    return loss


if __name__ == "__main__":
    key = jax.random.PRNGKey(0)
    k1, k2, k3, k4 = jax.random.split(key, 4)

    # 1) Small single-tile problem (tile = m_pad = 128, grid (1, 1)), f32, r=4.
    N, r, D = 8, 4, 32
    a = jax.random.normal(k1, (N, r, D), dtype=jnp.float32)
    loss, loss_dict = evd_lora_loss(a, reduction="mean")
    loss = jax.block_until_ready(loss)
    ref = _reference_loss(a, reduction="mean")
    assert jnp.allclose(loss, ref, rtol=1e-4, atol=1e-4), (loss, ref)

    loss_vec, _ = evd_lora_loss(a, reduction="none")
    jax.block_until_ready(loss_vec)
    ref_vec = _reference_loss(a, reduction="none")
    assert loss_vec.shape == (N,)
    assert jnp.allclose(loss_vec, ref_vec, rtol=1e-4, atol=1e-4)

    # 2) Multi-block grid + padded-row compensation
    #    (M = 640 -> tile 384, m_pad 768, 2x2 grid, 128 padded rows).
    N2, r2, D2 = 160, 4, 32
    a2 = jax.random.normal(k2, (N2, r2, D2), dtype=jnp.float32)
    loss2, _ = evd_lora_loss(a2, reduction="mean")
    loss2 = jax.block_until_ready(loss2)
    ref2 = _reference_loss(a2, reduction="mean")
    assert jnp.allclose(loss2, ref2, rtol=5e-4, atol=5e-4), (loss2, ref2)

    # 3) bf16 inputs: the kernel feeds the MXU bf16 natively (f32 accumulation).
    a3 = jax.random.normal(k3, (N, r, D), dtype=jnp.float32).astype(jnp.bfloat16)
    loss3, _ = evd_lora_loss(a3, reduction="mean")
    loss3 = jax.block_until_ready(loss3)
    ref3 = _reference_loss(a3, reduction="mean")   # same bf16 values, f32 math
    assert jnp.allclose(loss3, ref3, rtol=2e-2, atol=2e-2), (loss3, ref3)

    # 4) Smallest allowed group size r = 2.
    N4, r4, D4 = 6, 2, 32
    a4 = jax.random.normal(k4, (N4, r4, D4), dtype=jnp.float32)
    loss4, _ = evd_lora_loss(a4, reduction="mean")
    loss4 = jax.block_until_ready(loss4)
    ref4 = _reference_loss(a4, reduction="mean")
    assert jnp.allclose(loss4, ref4, rtol=1e-4, atol=1e-4), (loss4, ref4)

    print("KERNEL_OK")
</pallas_src>

<mosaic_0001>
module attributes {stable_mosaic.version = 11 : i64} {
  func.func @_lora_kernel(%arg0: i32, %arg1: i32, %arg2: memref<128x32xf32, #tpu.memory_space<vmem>>, %arg3: memref<128x32xf32, #tpu.memory_space<vmem>>, %arg4: memref<2x128xf32, #tpu.memory_space<vmem>>, %arg5: memref<1x128xf32, #tpu.memory_space<vmem>>) attributes {dimension_semantics = [#tpu.dimension_semantics<parallel>, #tpu.dimension_semantics<arbitrary>], iteration_bounds = array<i64: 1, 1>, scalar_prefetch = 0 : i64, scratch_operands = 1 : i64, tpu.core_type = #tpu.core_type<tc>, window_params = [{transform_indices = @transform_0, window_bounds = array<i64: 128, 32>}, {transform_indices = @transform_1, window_bounds = array<i64: 128, 32>}, {transform_indices = @transform_2, window_bounds = array<i64: 2, 128>}]} {
    %c0_i32 = arith.constant 0 : i32
    %0 = arith.cmpi eq, %arg1, %c0_i32 : i32
    %1 = arith.extui %0 : i1 to i32
    %c0_i32_0 = arith.constant 0 : i32
    %2 = arith.cmpi ne, %1, %c0_i32_0 : i32
    scf.if %2 {
      %cst_13 = arith.constant 0.000000e+00 : f32
      %20 = vector.broadcast %cst_13 : f32 to vector<1x128xf32>
      %c0_14 = arith.constant 0 : index
      %c0_15 = arith.constant 0 : index
      %21 = vector.load %arg5[%c0_14, %c0_15] : memref<1x128xf32, #tpu.memory_space<vmem>>, vector<1x128xf32>
      tpu.vector_store %arg5[%c0_14, %c0_15], %20 {strides = array<i32>} : memref<1x128xf32, #tpu.memory_space<vmem>>, vector<1x128xf32>,
    } else {
    }
    %c0 = arith.constant 0 : index
    %c0_1 = arith.constant 0 : index
    %3 = vector.load %arg2[%c0, %c0_1] : memref<128x32xf32, #tpu.memory_space<vmem>>, vector<128x32xf32>
    %c0_2 = arith.constant 0 : index
    %c0_3 = arith.constant 0 : index
    %4 = vector.load %arg3[%c0_2, %c0_3] : memref<128x32xf32, #tpu.memory_space<vmem>>, vector<128x32xf32>
    %cst = arith.constant dense<0.000000e+00> : vector<128x128xf32>
    %5 = tpu.matmul %4, %3, %cst {dimension_numbers = #tpu.dot_dimension_numbers<[1], [1], [0], [0], [0, 0, 1, 0], [], []>} : vector<128x32xf32>, vector<128x32xf32>, vector<128x128xf32> -> vector<128x128xf32>
    %6 = arith.mulf %5, %5 : vector<128x128xf32>
    %cst_4 = arith.constant 9.99999993E-9 : f32
    %7 = vector.broadcast %cst_4 : f32 to vector<128x128xf32>
    %8 = arith.maximumf %6, %7 : vector<128x128xf32>
    %c0_5 = arith.constant 0 : index
    %c0_6 = arith.constant 0 : index
    %9 = vector.load %arg5[%c0_5, %c0_6] : memref<1x128xf32, #tpu.memory_space<vmem>>, vector<1x128xf32>
    %cst_7 = arith.constant dense<0.000000e+00> : vector<128xf32>
    %10 = vector.multi_reduction <add>, %8, %cst_7 [0] : vector<128x128xf32> to vector<128xf32>
    %11 = vector.shape_cast %10 : vector<128xf32> to vector<1x128xf32>
    %12 = arith.addf %9, %11 : vector<1x128xf32>
    %c0_8 = arith.constant 0 : index
    %c0_9 = arith.constant 0 : index
    %13 = vector.load %arg5[%c0_8, %c0_9] : memref<1x128xf32, #tpu.memory_space<vmem>>, vector<1x128xf32>
    tpu.vector_store %arg5[%c0_8, %c0_9], %12 {strides = array<i32>} : memref<1x128xf32, #tpu.memory_space<vmem>>, vector<1x128xf32>,
    %14 = arith.cmpi eq, %arg1, %arg0 : i32
    %15 = arith.extui %14 : i1 to i32
    %c0_i32_10 = arith.constant 0 : i32
    %16 = arith.cmpi ne, %15, %c0_i32_10 : i32
    scf.if %16 {
      %20 = tpu.iota {dimensions = array<i32: 0>} : vector<128x1xi32>
      %21 = tpu.iota {dimensions = array<i32: 1>} : vector<1x128xi32>
      %c2_i32 = arith.constant 2 : i32
      %22 = vector.broadcast %c2_i32 : i32 to vector<128x1xi32>
      %23 = arith.shrsi %20, %22 : vector<128x1xi32>
      %c2_i32_13 = arith.constant 2 : i32
      %24 = vector.broadcast %c2_i32_13 : i32 to vector<1x128xi32>
      %25 = arith.shrsi %21, %24 : vector<1x128xi32>
      %26 = vector.broadcast %23 : vector<128x1xi32> to vector<128x128xi32>
      %27 = vector.broadcast %25 : vector<1x128xi32> to vector<128x128xi32>
      %28 = arith.cmpi eq, %26, %27 : vector<128x128xi32>
      %29 = vector.broadcast %20 : vector<128x1xi32> to vector<128x128xi32>
      %30 = vector.broadcast %21 : vector<1x128xi32> to vector<128x128xi32>
      %31 = arith.cmpi ne, %29, %30 : vector<128x128xi32>
      %32 = arith.andi %28, %31 : vector<128x128xi1>
      %cst_14 = arith.constant 0.000000e+00 : f32
      %33 = vector.broadcast %cst_14 : f32 to vector<128x128xf32>
      %34 = arith.select %32, %5, %33 : vector<128x128xi1>, vector<128x128xf32>
      %cst_15 = arith.constant 0.000000e+00 : f32
      %35 = vector.broadcast %cst_15 : f32 to vector<128x128xf32>
      %36 = arith.select %28, %8, %35 : vector<128x128xi1>, vector<128x128xf32>
      %cst_16 = arith.constant dense<0.000000e+00> : vector<128xf32>
      %37 = vector.multi_reduction <add>, %34, %cst_16 [0] : vector<128x128xf32> to vector<128xf32>
      %38 = vector.shape_cast %37 : vector<128xf32> to vector<1x128xf32>
      %c0_17 = arith.constant 0 : index
      %c0_18 = arith.constant 0 : index
      %39 = vector.load %arg4[%c0_17, %c0_18] : memref<2x128xf32, #tpu.memory_space<vmem>>, vector<1x128xf32>
      tpu.vector_store %arg4[%c0_17, %c0_18], %38 {strides = array<i32>} : memref<2x128xf32, #tpu.memory_space<vmem>>, vector<1x128xf32>,
      %cst_19 = arith.constant dense<0.000000e+00> : vector<128xf32>
      %40 = vector.multi_reduction <add>, %36, %cst_19 [0] : vector<128x128xf32> to vector<128xf32>
      %41 = vector.shape_cast %40 : vector<128xf32> to vector<1x128xf32>
      %cst_20 = arith.constant 0.000000e+00 : f32
      %42 = vector.broadcast %cst_20 : f32 to vector<1x128xf32>
      %43 = arith.subf %42, %41 : vector<1x128xf32>
      %c1 = arith.constant 1 : index
      %c0_21 = arith.constant 0 : index
      %44 = vector.load %arg4[%c1, %c0_21] : memref<2x128xf32, #tpu.memory_space<vmem>>, vector<1x128xf32>
      tpu.vector_store %arg4[%c1, %c0_21], %43 {strides = array<i32>} : memref<2x128xf32, #tpu.memory_space<vmem>>, vector<1x128xf32>,
    } else {
    }
    %c0_i32_11 = arith.constant 0 : i32
    %17 = arith.cmpi eq, %arg1, %c0_i32_11 : i32
    %18 = arith.extui %17 : i1 to i32
    %c0_i32_12 = arith.constant 0 : i32
    %19 = arith.cmpi ne, %18, %c0_i32_12 : i32
    scf.if %19 {
      %c1 = arith.constant 1 : index
      %c0_13 = arith.constant 0 : index
      %20 = vector.load %arg4[%c1, %c0_13] : memref<2x128xf32, #tpu.memory_space<vmem>>, vector<1x128xf32>
      %c0_14 = arith.constant 0 : index
      %c0_15 = arith.constant 0 : index
      %21 = vector.load %arg5[%c0_14, %c0_15] : memref<1x128xf32, #tpu.memory_space<vmem>>, vector<1x128xf32>
      %cst_16 = arith.constant 9.59999966E-7 : f32
      %22 = vector.broadcast %cst_16 : f32 to vector<1x128xf32>
      %23 = arith.subf %21, %22 : vector<1x128xf32>
      %24 = arith.addf %20, %23 : vector<1x128xf32>
      %c1_17 = arith.constant 1 : index
      %c0_18 = arith.constant 0 : index
      %25 = vector.load %arg4[%c1_17, %c0_18] : memref<2x128xf32, #tpu.memory_space<vmem>>, vector<1x128xf32>
      tpu.vector_store %arg4[%c1_17, %c0_18], %24 {strides = array<i32>} : memref<2x128xf32, #tpu.memory_space<vmem>>, vector<1x128xf32>,
    } else {
    }
    return
  }
  func.func @transform_0(%arg0: i32, %arg1: i32) -> (i32, i32) {
    %c0_i32 = arith.constant 0 : i32
    %c0_i32_0 = arith.constant 0 : i32
    return %arg0, %c0_i32 : i32, i32
  }
  func.func @transform_1(%arg0: i32, %arg1: i32) -> (i32, i32) {
    %c0_i32 = arith.constant 0 : i32
    %c0_i32_0 = arith.constant 0 : i32
    return %arg1, %c0_i32 : i32, i32
  }
  func.func @transform_2(%arg0: i32, %arg1: i32) -> (i32, i32) {
    %c0_i32 = arith.constant 0 : i32
    %c0_i32_0 = arith.constant 0 : i32
    return %c0_i32, %arg0 : i32, i32
  }
}

</mosaic_0001>

<llo_original>
// kernel: tpu_custom_call.1
$region0: #{tpu_custom_call.1}
  #allocation0 [shape = 'u32[]', space=smem, size = 0x4, offset = 0x4, fixed_abs, tag = 'smem constant byte address 0x4 - core index']
  #allocation1 [shape = 'u32[144,128]{1,0:T(1,128)}', space=vmem, size = 0x12000, scoped, tag = 'internal scratch']
  #allocation2 [shape = 'f32[1,128]{1,0:T(1,128)}', space=vmem, size = 0x200, scoped, tag = 'scratch operand']
  %s0 = inlined_call_operand.vmem [shape: f32[128,32], index: 0, kind: input, shape index: {}]
  %s1 = inlined_call_operand.vmem [shape: f32[128,32], index: 1, kind: input, shape index: {}]
  %s2 = inlined_call_operand.hbm [shape: f32[2,128], index: 2, kind: output, shape index: {}]
  %s3 = sld [smem:[#allocation0]]
  $region30: #{tpu_custom_call.1} parent=0
    _
  %s5 = ssub.s32 1, %s3
  %s6 = scalar_select 0, %s5, %s3
  $region1: #{tpu_custom_call.1} parent=0
    #allocation3 [shape = 'u8[1024]{0}', space=vmem, size = 0x400, scoped, tag = 'output window, operand 0, single buffered']
    #allocation4 [shape = 's32[1]{0}', space=sflag, size = 0x4, scoped, tag = 'scoped memory for tpu_custom_call.1']
    %7 = vsyncpa [#allocation4], 0
    // Predicated region
    $region2: #{tpu_custom_call.1} parent=1 // pred_check
      _
    $region3: #{tpu_custom_call.1} parent=1 // pred_check_branch
      %9 = sbr.rel (0) target = $region5
    $region4: #{tpu_custom_call.1} parent=1 // pred_region
      _
    $region5: #{tpu_custom_call.1} parent=1 // pred_fallthru
      _
    // Predicated region
    $region6: #{tpu_custom_call.1} parent=1 // pred_check
      _
    $region7: #{tpu_custom_call.1} parent=1 // pred_check_branch
      %11 = sbr.rel (0) target = $region9
    $region8: #{tpu_custom_call.1} parent=1 // pred_region
      _
    $region9: #{tpu_custom_call.1} parent=1 // pred_fallthru
      _
    %p12 = scmp.eq.s32.totalorder 0, 0
    // Predicated region
    $region10: #{tpu_custom_call.1} parent=1 // pred_check
      %p13 = pneg %p12
    $region11: #{tpu_custom_call.1} parent=1 // pred_check_branch
      %15 = sbr.rel (%p13) target = $region13
    $region12: #{tpu_custom_call.1} parent=1 // pred_region
      %16 = vst [vmem:[#allocation2] sm:$0x1] 0.0
    $region13: #{tpu_custom_call.1} parent=1 // pred_fallthru
      _
    %v17 = vld [vmem:[%s0] sm:$0xff]
    %v18 = vld [vmem:[%s0 + $0x8] sm:$0xff]
    %v19 = vld [vmem:[%s0 + $0x10] sm:$0xff]
    %v20 = vld [vmem:[%s0 + $0x18] sm:$0xff]
    %v21 = vld [vmem:[%s0 + $0x20] sm:$0xff]
    %v22 = vld [vmem:[%s0 + $0x28] sm:$0xff]
    %v23 = vld [vmem:[%s0 + $0x30] sm:$0xff]
    %v24 = vld [vmem:[%s0 + $0x38] sm:$0xff]
    %v25 = vld [vmem:[%s0 + $0x40] sm:$0xff]
    %v26 = vld [vmem:[%s0 + $0x48] sm:$0xff]
    %v27 = vld [vmem:[%s0 + $0x50] sm:$0xff]
    %v28 = vld [vmem:[%s0 + $0x58] sm:$0xff]
    %v29 = vld [vmem:[%s0 + $0x60] sm:$0xff]
    %v30 = vld [vmem:[%s0 + $0x68] sm:$0xff]
    %v31 = vld [vmem:[%s0 + $0x70] sm:$0xff]
    %v32 = vld [vmem:[%s0 + $0x78] sm:$0xff]
    %v33 = vld [vmem:[%s1] sm:$0xff]
    %v34 = vld [vmem:[%s1 + $0x8] sm:$0xff]
    %v35 = vld [vmem:[%s1 + $0x10] sm:$0xff]
    %v36 = vld [vmem:[%s1 + $0x18] sm:$0xff]
    %v37 = vld [vmem:[%s1 + $0x20] sm:$0xff]
    %v38 = vld [vmem:[%s1 + $0x28] sm:$0xff]
    %v39 = vld [vmem:[%s1 + $0x30] sm:$0xff]
    %v40 = vld [vmem:[%s1 + $0x38] sm:$0xff]
    %v41 = vld [vmem:[%s1 + $0x40] sm:$0xff]
    %v42 = vld [vmem:[%s1 + $0x48] sm:$0xff]
    %v43 = vld [vmem:[%s1 + $0x50] sm:$0xff]
    %v44 = vld [vmem:[%s1 + $0x58] sm:$0xff]
    %v45 = vld [vmem:[%s1 + $0x60] sm:$0xff]
    %v46 = vld [vmem:[%s1 + $0x68] sm:$0xff]
    %v47 = vld [vmem:[%s1 + $0x70] sm:$0xff]
    %v48 = vld [vmem:[%s1 + $0x78] sm:$0xff]
    %vm49 = vcmask 261120
    %v51 = vsel %vm49, %v33, 0
    %v54 = vsel %vm49, %v34, 0
    %v57 = vsel %vm49, %v35, 0
    %v60 = vsel %vm49, %v36, 0
    %v63 = vsel %vm49, %v37, 0
    %v66 = vsel %vm49, %v38, 0
    %v69 = vsel %vm49, %v39, 0
    %v72 = vsel %vm49, %v40, 0
    %v75 = vsel %vm49, %v41, 0
    %v78 = vsel %vm49, %v42, 0
    %v81 = vsel %vm49, %v43, 0
    %v84 = vsel %vm49, %v44, 0
    %v87 = vsel %vm49, %v45, 0
    %v90 = vsel %vm49, %v46, 0
    %v93 = vsel %vm49, %v47, 0
    %v96 = vsel %vm49, %v48, 0
    %v99 = vsel %vm49, %v17, 0
    %v102 = vsel %vm49, %v18, 0
    %v105 = vsel %vm49, %v19, 0
    %v108 = vsel %vm49, %v20, 0
    %v111 = vsel %vm49, %v21, 0
    %v114 = vsel %vm49, %v22, 0
    %v117 = vsel %vm49, %v23, 0
    %v120 = vsel %vm49, %v24, 0
    %v123 = vsel %vm49, %v25, 0
    %v126 = vsel %vm49, %v26, 0
    %v129 = vsel %vm49, %v27, 0
    %v132 = vsel %vm49, %v28, 0
    %v135 = vsel %vm49, %v29, 0
    %v138 = vsel %vm49, %v30, 0
    %v141 = vsel %vm49, %v31, 0
    %v144 = vsel %vm49, %v32, 0
    %146 = vmatprep.subr.mxu0 0.0
    %147 = vmatpush1.xpose.msra.mxu0 %v99
    %148 = vmatprep.subr.mxu0 0.0
    %149 = vmatpush1.xpose.msra.mxu0 %v102
    %150 = vmatprep.subr.mxu0 0.0
    %151 = vmatpush1.xpose.msra.mxu0 %v105
    %152 = vmatprep.subr.mxu0 0.0
    %153 = vmatpush1.xpose.msra.mxu0 %v108
    %154 = vmatprep.subr.mxu0 0.0
    %155 = vmatpush1.xpose.msra.mxu0 %v111
    %156 = vmatprep.subr.mxu0 0.0
    %157 = vmatpush1.xpose.msra.mxu0 %v114
    %158 = vmatprep.subr.mxu0 0.0
    %159 = vmatpush1.xpose.msra.mxu0 %v117
    %160 = vmatprep.subr.mxu0 0.0
    %161 = vmatpush1.xpose.msra.mxu0 %v120
    %162 = vmatprep.subr.mxu0 0.0
    %163 = vmatpush1.xpose.msra.mxu0 %v123
    %164 = vmatprep.subr.mxu0 0.0
    %165 = vmatpush1.xpose.msra.mxu0 %v126
    %166 = vmatprep.subr.mxu0 0.0
    %167 = vmatpush1.xpose.msra.mxu0 %v129
    %168 = vmatprep.subr.mxu0 0.0
    %169 = vmatpush1.xpose.msra.mxu0 %v132
    %170 = vmatprep.subr.mxu0 0.0
    %171 = vmatpush1.xpose.msra.mxu0 %v135
    %172 = vmatprep.subr.mxu0 0.0
    %173 = vmatpush1.xpose.msra.mxu0 %v138
    %174 = vmatprep.subr.mxu0 0.0
    %175 = vmatpush1.xpose.msra.mxu0 %v141
    %176 = vmatprep.subr.mxu0 0.0
    %177 = vmatpush1.xpose.msra.mxu0 %v144
    %178 = vmatprep.subr.mxu0 0.0
    %179 = vmatpush1.xpose.msra.mxu0 0.0
    %180 = vmatprep.subr.mxu0 0.0
    %181 = vmatpush1.xpose.msra.mxu0 0.0
    %182 = vmatprep.subr.mxu0 0.0
    %183 = vmatpush1.xpose.msra.mxu0 0.0
    %184 = vmatprep.subr.mxu0 0.0
    %185 = vmatpush1.xpose.msra.mxu0 0.0
    %186 = vmatprep.subr.mxu0 0.0
    %187 = vmatpush1.xpose.msra.mxu0 0.0
    %188 = vmatprep.subr.mxu0 0.0
    %189 = vmatpush1.xpose.msra.mxu0 0.0
    %190 = vmatprep.subr.mxu0 0.0
    %191 = vmatpush1.xpose.msra.mxu0 0.0
    %192 = vmatprep.subr.mxu0 0.0
    %193 = vmatpush1.xpose.msra.mxu0 0.0
    %194 = vmatprep.subr.mxu0 0.0
    %195 = vmatpush1.xpose.msra.mxu0 0.0
    %196 = vmatprep.subr.mxu0 0.0
    %197 = vmatpush1.xpose.msra.mxu0 0.0
    %198 = vmatprep.subr.mxu0 0.0
    %199 = vmatpush1.xpose.msra.mxu0 0.0
    %200 = vmatprep.subr.mxu0 0.0
    %201 = vmatpush1.xpose.msra.mxu0 0.0
    %202 = vmatprep.subr.mxu0 0.0
    %203 = vmatpush1.xpose.msra.mxu0 0.0
    %204 = vmatprep.subr.mxu0 0.0
    %205 = vmatpush1.xpose.msra.mxu0 0.0
    %206 = vmatprep.subr.mxu0 0.0
    %207 = vmatpush1.xpose.msra.mxu0 0.0
    %208 = vmatprep.subr.mxu0 0.0
    %209 = vmatpush1.xpose.msra.mxu0 0.0
    %210 = vmatprep.mubr.f32.mxu0 0.0
    %211 = vmatmul.mubr.f32.gmra.mrb[0].mxu0 %v51
    %v212 = vpop.f32.mrb[0].mxu0
    %v213 = vadd.f32 0.0, %v212
    %v214 = vpop.f32.mrb[0].mxu0
    %215 = vmatprep.mubr.f32.mxu0 0.0
    %216 = vmatmul.mubr.f32.gmra.mrb[0].mxu0 %v54
    %v217 = vpop.f32.mrb[0].mxu0
    %v218 = vadd.f32 0.0, %v217
    %v219 = vpop.f32.mrb[0].mxu0
    %220 = vmatprep.mubr.f32.mxu0 0.0
    %221 = vmatmul.mubr.f32.gmra.mrb[0].mxu0 %v57
    %v222 = vpop.f32.mrb[0].mxu0
    %v223 = vadd.f32 0.0, %v222
    %v224 = vpop.f32.mrb[0].mxu0
    %225 = vmatprep.mubr.f32.mxu0 0.0
    %226 = vmatmul.mubr.f32.gmra.mrb[0].mxu0 %v60
    %v227 = vpop.f32.mrb[0].mxu0
    %v228 = vadd.f32 0.0, %v227
    %v229 = vpop.f32.mrb[0].mxu0
    %230 = vmatprep.mubr.f32.mxu0 0.0
    %231 = vmatmul.mubr.f32.gmra.mrb[0].mxu0 %v63
    %v232 = vpop.f32.mrb[0].mxu0
    %v233 = vadd.f32 0.0, %v232
    %v234 = vpop.f32.mrb[0].mxu0
    %235 = vmatprep.mubr.f32.mxu0 0.0
    %236 = vmatmul.mubr.f32.gmra.mrb[0].mxu0 %v66
    %v237 = vpop.f32.mrb[0].mxu0
    %v238 = vadd.f32 0.0, %v237
    %v239 = vpop.f32.mrb[0].mxu0
    %240 = vmatprep.mubr.f32.mxu0 0.0
    %241 = vmatmul.mubr.f32.gmra.mrb[0].mxu0 %v69
    %v242 = vpop.f32.mrb[0].mxu0
    %v243 = vadd.f32 0.0, %v242
    %v244 = vpop.f32.mrb[0].mxu0
    %245 = vmatprep.mubr.f32.mxu0 0.0
    %246 = vmatmul.mubr.f32.gmra.mrb[0].mxu0 %v72
    %v247 = vpop.f32.mrb[0].mxu0
    %v248 = vadd.f32 0.0, %v247
    %v249 = vpop.f32.mrb[0].mxu0
    %250 = vmatprep.mubr.f32.mxu0 0.0
    %251 = vmatmul.mubr.f32.gmra.mrb[0].mxu0 %v75
    %v252 = vpop.f32.mrb[0].mxu0
    %v253 = vadd.f32 0.0, %v252
    %v254 = vpop.f32.mrb[0].mxu0
    %255 = vmatprep.mubr.f32.mxu0 0.0
    %256 = vmatmul.mubr.f32.gmra.mrb[0].mxu0 %v78
    %v257 = vpop.f32.mrb[0].mxu0
    %v258 = vadd.f32 0.0, %v257
    %v259 = vpop.f32.mrb[0].mxu0
    %260 = vmatprep.mubr.f32.mxu0 0.0
    %261 = vmatmul.mubr.f32.gmra.mrb[0].mxu0 %v81
    %v262 = vpop.f32.mrb[0].mxu0
    %v263 = vadd.f32 0.0, %v262
    %v264 = vpop.f32.mrb[0].mxu0
    %265 = vmatprep.mubr.f32.mxu0 0.0
    %266 = vmatmul.mubr.f32.gmra.mrb[0].mxu0 %v84
    %v267 = vpop.f32.mrb[0].mxu0
    %v268 = vadd.f32 0.0, %v267
    %v269 = vpop.f32.mrb[0].mxu0
    %270 = vmatprep.mubr.f32.mxu0 0.0
    %271 = vmatmul.mubr.f32.gmra.mrb[0].mxu0 %v87
    %v272 = vpop.f32.mrb[0].mxu0
    %v273 = vadd.f32 0.0, %v272
    %v274 = vpop.f32.mrb[0].mxu0
    %275 = vmatprep.mubr.f32.mxu0 0.0
    %276 = vmatmul.mubr.f32.gmra.mrb[0].mxu0 %v90
    %v277 = vpop.f32.mrb[0].mxu0
    %v278 = vadd.f32 0.0, %v277
    %v279 = vpop.f32.mrb[0].mxu0
    %280 = vmatprep.mubr.f32.mxu0 0.0
    %281 = vmatmul.mubr.f32.gmra.mrb[0].mxu0 %v93
    %v282 = vpop.f32.mrb[0].mxu0
    %v283 = vadd.f32 0.0, %v282
    %v284 = vpop.f32.mrb[0].mxu0
    %285 = vmatprep.mubr.f32.mxu0 0.0
    %286 = vmatmul.mubr.f32.gmra.mrb[0].mxu0 %v96
    %v287 = vpop.f32.mrb[0].mxu0
    %v288 = vadd.f32 0.0, %v287
    %v289 = vpop.f32.mrb[0].mxu0
    %290 = vdwg.mxu0
    %v291 = vmul.f32 %v213, %v213
    %v292 = vmul.f32 %v218, %v218
    %v293 = vmul.f32 %v223, %v223
    %v294 = vmul.f32 %v228, %v228
    %v295 = vmul.f32 %v233, %v233
    %v296 = vmul.f32 %v238, %v238
    %v297 = vmul.f32 %v243, %v243
    %v298 = vmul.f32 %v248, %v248
    %v299 = vmul.f32 %v253, %v253
    %v300 = vmul.f32 %v258, %v258
    %v301 = vmul.f32 %v263, %v263
    %v302 = vmul.f32 %v268, %v268
    %v303 = vmul.f32 %v273, %v273
    %v304 = vmul.f32 %v278, %v278
    %v305 = vmul.f32 %v283, %v283
    %v306 = vmul.f32 %v288, %v288
    %v307 = vmax.f32 %v291, 1e-08
    %v308 = vmax.f32 %v292, 1e-08
    %v309 = vmax.f32 %v293, 1e-08
    %v310 = vmax.f32 %v294, 1e-08
    %v311 = vmax.f32 %v295, 1e-08
    %v312 = vmax.f32 %v296, 1e-08
    %v313 = vmax.f32 %v297, 1e-08
    %v314 = vmax.f32 %v298, 1e-08
    %v315 = vmax.f32 %v299, 1e-08
    %v316 = vmax.f32 %v300, 1e-08
    %v317 = vmax.f32 %v301, 1e-08
    %v318 = vmax.f32 %v302, 1e-08
    %v319 = vmax.f32 %v303, 1e-08
    %v320 = vmax.f32 %v304, 1e-08
    %v321 = vmax.f32 %v305, 1e-08
    %v322 = vmax.f32 %v306, 1e-08
    %v323 = vld [vmem:[#allocation2] sm:$0x1]
    %v324 = vadd.f32 %v307, %v308
    %v325 = vadd.f32 %v324, %v309
    %v326 = vadd.f32 %v325, %v310
    %v327 = vadd.f32 %v326, %v311
    %v328 = vadd.f32 %v327, %v312
    %v329 = vadd.f32 %v328, %v313
    %v330 = vadd.f32 %v329, %v314
    %v331 = vadd.f32 %v330, %v315
    %v332 = vadd.f32 %v331, %v316
    %v333 = vadd.f32 %v332, %v317
    %v334 = vadd.f32 %v333, %v318
    %v335 = vadd.f32 %v334, %v319
    %v336 = vadd.f32 %v335, %v320
    %v337 = vadd.f32 %v336, %v321
    %v338 = vadd.f32 %v337, %v322
    %v339 = vrot.slane %v338, 4
    %v340 = vadd.f32 %v338, %v339
    %v341 = vrot.slane %v340, 2
    %v342 = vadd.f32 %v340, %v341
    %v343 = vrot.slane %v342, 1
    %v344 = vadd.f32 %v342, %v343
    %v345 = vadd.f32 %v323, %v344
    %346 = vst [vmem:[#allocation2] sm:$0x1] %v345
    %p347 = scmp.eq.s32.totalorder 0, 0
    // Predicated region
    $region14: #{tpu_custom_call.1} parent=1 // pred_check
      %p348 = pneg %p347
    $region15: #{tpu_custom_call.1} parent=1 // pred_check_branch
      %350 = sbr.rel (%p348) target = $region17
    $region16: #{tpu_custom_call.1} parent=1 // pred_region
      %v351 = vlaneseq
      %v352 = vshrl.u32 %v351, 7
      %v353 = vadd.s32 %v352, 8
      %v354 = vadd.s32 %v352, 16
      %v355 = vadd.s32 %v352, 24
      %v356 = vadd.s32 %v352, 32
      %v357 = vadd.s32 %v352, 40
      %v358 = vadd.s32 %v352, 48
      %v359 = vadd.s32 %v352, 56
      %v360 = vadd.s32 %v352, 64
      %v361 = vadd.s32 %v352, 72
      %v362 = vadd.s32 %v352, 80
      %v363 = vadd.s32 %v352, 88
      %v364 = vadd.s32 %v352, 96
      %v365 = vadd.s32 %v352, 104
      %v366 = vadd.s32 %v352, 112
      %v367 = vadd.s32 %v352, 120
      %v368 = vlaneseq
      %v369 = vand.u32 %v368, 127
      %v370 = vshra.s32 %v352, 2
      %v371 = vshra.s32 %v353, 2
      %v372 = vshra.s32 %v354, 2
      %v373 = vshra.s32 %v355, 2
      %v374 = vshra.s32 %v356, 2
      %v375 = vshra.s32 %v357, 2
      %v376 = vshra.s32 %v358, 2
      %v377 = vshra.s32 %v359, 2
      %v378 = vshra.s32 %v360, 2
      %v379 = vshra.s32 %v361, 2
      %v380 = vshra.s32 %v362, 2
      %v381 = vshra.s32 %v363, 2
      %v382 = vshra.s32 %v364, 2
      %v383 = vshra.s32 %v365, 2
      %v384 = vshra.s32 %v366, 2
      %v385 = vshra.s32 %v367, 2
      %v386 = vshra.s32 %v369, 2
      %vm387 = vcmp.eq.s32.totalorder %v370, %v386
      %vm388 = vcmp.eq.s32.totalorder %v371, %v386
      %vm389 = vcmp.eq.s32.totalorder %v372, %v386
      %vm390 = vcmp.eq.s32.totalorder %v373, %v386
      %vm391 = vcmp.eq.s32.totalorder %v374, %v386
      %vm392 = vcmp.eq.s32.totalorder %v375, %v386
      %vm393 = vcmp.eq.s32.totalorder %v376, %v386
      %vm394 = vcmp.eq.s32.totalorder %v377, %v386
      %vm395 = vcmp.eq.s32.totalorder %v378, %v386
      %vm396 = vcmp.eq.s32.totalorder %v379, %v386
      %vm397 = vcmp.eq.s32.totalorder %v380, %v386
      %vm398 = vcmp.eq.s32.totalorder %v381, %v386
      %vm399 = vcmp.eq.s32.totalorder %v382, %v386
      %vm400 = vcmp.eq.s32.totalorder %v383, %v386
      %vm401 = vcmp.eq.s32.totalorder %v384, %v386
      %vm402 = vcmp.eq.s32.totalorder %v385, %v386
      %vm403 = vcmp.ne.s32.totalorder %v352, %v369
      %vm404 = vcmp.ne.s32.totalorder %v353, %v369
      %vm405 = vcmp.ne.s32.totalorder %v354, %v369
      %vm406 = vcmp.ne.s32.totalorder %v355, %v369
      %vm407 = vcmp.ne.s32.totalorder %v356, %v369
      %vm408 = vcmp.ne.s32.totalorder %v357, %v369
      %vm409 = vcmp.ne.s32.totalorder %v358, %v369
      %vm410 = vcmp.ne.s32.totalorder %v359, %v369
      %vm411 = vcmp.ne.s32.totalorder %v360, %v369
      %vm412 = vcmp.ne.s32.totalorder %v361, %v369
      %vm413 = vcmp.ne.s32.totalorder %v362, %v369
      %vm414 = vcmp.ne.s32.totalorder %v363, %v369
      %vm415 = vcmp.ne.s32.totalorder %v364, %v369
      %vm416 = vcmp.ne.s32.totalorder %v365, %v369
      %vm417 = vcmp.ne.s32.totalorder %v366, %v369
      %vm418 = vcmp.ne.s32.totalorder %v367, %v369
      %vm419 = vmand %vm387, %vm403
      %vm420 = vmand %vm388, %vm404
      %vm421 = vmand %vm389, %vm405
      %vm422 = vmand %vm390, %vm406
      %vm423 = vmand %vm391, %vm407
      %vm424 = vmand %vm392, %vm408
      %vm425 = vmand %vm393, %vm409
      %vm426 = vmand %vm394, %vm410
      %vm427 = vmand %vm395, %vm411
      %vm428 = vmand %vm396, %vm412
      %vm429 = vmand %vm397, %vm413
      %vm430 = vmand %vm398, %vm414
      %vm431 = vmand %vm399, %vm415
      %vm432 = vmand %vm400, %vm416
      %vm433 = vmand %vm401, %vm417
      %vm434 = vmand %vm402, %vm418
      %v435 = vsel %vm419, %v213, 0.0
      %v436 = vsel %vm420, %v218, 0.0
      %v437 = vsel %vm421, %v223, 0.0
      %v438 = vsel %vm422, %v228, 0.0
      %v439 = vsel %vm423, %v233, 0.0
      %v440 = vsel %vm424, %v238, 0.0
      %v441 = vsel %vm425, %v243, 0.0
      %v442 = vsel %vm426, %v248, 0.0
      %v443 = vsel %vm427, %v253, 0.0
      %v444 = vsel %vm428, %v258, 0.0
      %v445 = vsel %vm429, %v263, 0.0
      %v446 = vsel %vm430, %v268, 0.0
      %v447 = vsel %vm431, %v273, 0.0
      %v448 = vsel %vm432, %v278, 0.0
      %v449 = vsel %vm433, %v283, 0.0
      %v450 = vsel %vm434, %v288, 0.0
      %v451 = vsel %vm387, %v307, 0.0
      %v452 = vsel %vm388, %v308, 0.0
      %v453 = vsel %vm389, %v309, 0.0
      %v454 = vsel %vm390, %v310, 0.0
      %v455 = vsel %vm391, %v311, 0.0
      %v456 = vsel %vm392, %v312, 0.0
      %v457 = vsel %vm393, %v313, 0.0
      %v458 = vsel %vm394, %v314, 0.0
      %v459 = vsel %vm395, %v315, 0.0
      %v460 = vsel %vm396, %v316, 0.0
      %v461 = vsel %vm397, %v317, 0.0
      %v462 = vsel %vm398, %v318, 0.0
      %v463 = vsel %vm399, %v319, 0.0
      %v464 = vsel %vm400, %v320, 0.0
      %v465 = vsel %vm401, %v321, 0.0
      %v466 = vsel %vm402, %v322, 0.0
      %v467 = vadd.f32 %v435, %v436
      %v468 = vadd.f32 %v467, %v437
      %v469 = vadd.f32 %v468, %v438
      %v470 = vadd.f32 %v469, %v439
      %v471 = vadd.f32 %v470, %v440
      %v472 = vadd.f32 %v471, %v441
      %v473 = vadd.f32 %v472, %v442
      %v474 = vadd.f32 %v473, %v443
      %v475 = vadd.f32 %v474, %v444
      %v476 = vadd.f32 %v475, %v445
      %v477 = vadd.f32 %v476, %v446
      %v478 = vadd.f32 %v477, %v447
      %v479 = vadd.f32 %v478, %v448
      %v480 = vadd.f32 %v479, %v449
      %v481 = vadd.f32 %v480, %v450
      %v482 = vrot.slane %v481, 4
      %v483 = vadd.f32 %v481, %v482
      %v484 = vrot.slane %v483, 2
      %v485 = vadd.f32 %v483, %v484
      %v486 = vrot.slane %v485, 1
      %v487 = vadd.f32 %v485, %v486
      %488 = vst [vmem:[#allocation3] sm:$0x1] %v487
      %v489 = vadd.f32 %v451, %v452
      %v490 = vadd.f32 %v489, %v453
      %v491 = vadd.f32 %v490, %v454
      %v492 = vadd.f32 %v491, %v455
      %v493 = vadd.f32 %v492, %v456
      %v494 = vadd.f32 %v493, %v457
      %v495 = vadd.f32 %v494, %v458
      %v496 = vadd.f32 %v495, %v459
      %v497 = vadd.f32 %v496, %v460
      %v498 = vadd.f32 %v497, %v461
      %v499 = vadd.f32 %v498, %v462
      %v500 = vadd.f32 %v499, %v463
      %v501 = vadd.f32 %v500, %v464
      %v502 = vadd.f32 %v501, %v465
      %v503 = vadd.f32 %v502, %v466
      %v504 = vrot.slane %v503, 4
      %v505 = vadd.f32 %v503, %v504
      %v506 = vrot.slane %v505, 2
      %v507 = vadd.f32 %v505, %v506
      %v508 = vrot.slane %v507, 1
      %v509 = vadd.f32 %v507, %v508
      %v510 = vsub.f32 0.0, %v509
      %511 = vst [vmem:[#allocation3 + $0x1] sm:$0x1] %v510
    $region17: #{tpu_custom_call.1} parent=1 // pred_fallthru
      _
    // Predicated region
    $region18: #{tpu_custom_call.1} parent=1 // pred_check
      %p512 = pneg %p12
    $region19: #{tpu_custom_call.1} parent=1 // pred_check_branch
      %514 = sbr.rel (%p512) target = $region21
    $region20: #{tpu_custom_call.1} parent=1 // pred_region
      %v515 = vld [vmem:[#allocation3 + $0x1] sm:$0x1]
      %v516 = vld [vmem:[#allocation2] sm:$0x1]
      %v517 = vsub.f32 %v516, 9.6e-07
      %v518 = vadd.f32 %v515, %v517
      %519 = vst [vmem:[#allocation3 + $0x1] sm:$0x1] %v518
    $region21: #{tpu_custom_call.1} parent=1 // pred_fallthru
      _
    // Predicated region
    $region22: #{tpu_custom_call.1} parent=1 // pred_check
      _
    $region23: #{tpu_custom_call.1} parent=1 // pred_check_branch
      %521 = sbr.rel (0) target = $region25
    $region24: #{tpu_custom_call.1} parent=1 // pred_region
      %s523 = ssub.s32 32, 32
      %524 = vsyncadd [#allocation4], %s523
      %s526 = sshll.u32 [#allocation3], 4
      %s527 = int_to_ptr.vmem [resolvable:$true] %s526
      %529 = dma.vmem_to_hbm [thread:$0]  %s527, 32, %s2, [#allocation4]
    $region25: #{tpu_custom_call.1} parent=1 // pred_fallthru
      _
    // Predicated region
    $region26: #{tpu_custom_call.1} parent=1 // pred_check
      _
    $region27: #{tpu_custom_call.1} parent=1 // pred_check_branch
      %531 = sbr.rel (0) target = $region29
    $region28: #{tpu_custom_call.1} parent=1 // pred_region
      %532 = dma.done [#allocation4], 32
    $region29: #{tpu_custom_call.1} parent=1 // pred_fallthru
      _
    %533 = vsyncpa [#allocation4], 1

</llo_original>
